<compile_context>
chip_gen: v6e
topology: v6e:2x2x1
jax: 0.10.0
libtpu: 0.0.40
codegen_flags: <defaults>
</compile_context>

<pallas_src>
import math

import jax
import jax.numpy as jnp
from jax import lax
from jax.experimental import pallas as pl
from jax.experimental.pallas import tpu as pltpu


def _round_up(v, m):
    return ((v + m - 1) // m) * m


def _pick_tile(total, unit, cap):
    """Largest multiple of `unit` that divides `total` (itself a multiple of
    `unit`) and is <= cap.  Guarantees zero tile-driven over-padding."""
    n = total // unit
    best = unit
    for g in range(1, n + 1):
        if n % g == 0 and g * unit <= cap:
            best = g * unit
    return best


def _tiled_bytes(tm, tk, tn, esize=4):
    # Double-buffered x / Wt / bias / out blocks (+ worst-case f32 acc).
    return 2 * (tm * tk + tk * tn + tn + tm * tn) * esize + tm * tn * 4


def _pick_tk(d128, tm, tn, budget, tk_max):
    n = d128 // 128
    for g in range(n, 0, -1):
        if n % g:
            continue
        tk = g * 128
        if tk > tk_max:
            continue
        if _tiled_bytes(tm, tk, tn) <= budget:
            return tk
    return 128


# ----------------------------- kernels ------------------------------------ #

def _make_fused_k_kernel(precision):
    """Whole reduction resident in VMEM: no K grid axis, no accumulator."""
    def kernel(x_ref, wt_ref, b_ref, o_ref):
        acc = jnp.dot(x_ref[...], wt_ref[...],
                      preferred_element_type=jnp.float32, precision=precision)
        o_ref[...] = (acc + b_ref[...].astype(jnp.float32)).astype(o_ref.dtype)
    return kernel


def _make_tiled_k_kernel_f32(precision):
    """K tiled; f32 output => accumulate directly into the resident o_ref."""
    def kernel(x_ref, wt_ref, b_ref, o_ref):
        k = pl.program_id(2)
        part = jnp.dot(x_ref[...], wt_ref[...],
                       preferred_element_type=jnp.float32, precision=precision)

        @pl.when(k == 0)
        def _():
            o_ref[...] = part

        @pl.when(k > 0)
        def _():
            o_ref[...] += part

        @pl.when(k == pl.num_programs(2) - 1)
        def _():
            o_ref[...] += b_ref[...]
    return kernel


def _make_tiled_k_kernel_acc(precision):
    """K tiled; non-f32 output => f32 VMEM accumulator, cast on last step."""
    def kernel(x_ref, wt_ref, b_ref, o_ref, acc_ref):
        k = pl.program_id(2)

        @pl.when(k == 0)
        def _():
            acc_ref[...] = jnp.zeros_like(acc_ref)

        acc_ref[...] += jnp.dot(x_ref[...], wt_ref[...],
                                preferred_element_type=jnp.float32,
                                precision=precision)

        @pl.when(k == pl.num_programs(2) - 1)
        def _():
            o_ref[...] = (acc_ref[...] + b_ref[...].astype(jnp.float32)
                          ).astype(o_ref.dtype)
    return kernel


# ----------------------------- wrappers ------------------------------------ #

def prepare_feature_regression_params(W, b):
    """Hoist ALL per-call weight preprocessing out of the timestep loop.

    Zeroes the diagonal of W (the `m` mask), transposes to (in, out) so the
    MXU consumes its native (K, N) layout, and pads features to a multiple of
    128 (lane-dense, unmasked stores).  Call once at model init.
    """
    D = W.shape[0]
    assert W.shape == (D, D) and b.shape == (D,)
    d128 = _round_up(D, 128)
    wm_t = (W * (1 - jnp.eye(D, dtype=W.dtype))).T      # (in, out), diag zeroed
    Wt_p = jnp.zeros((d128, d128), W.dtype).at[:D, :D].set(wm_t)
    b_p = jnp.zeros((1, d128), b.dtype).at[0, :D].set(b)
    return Wt_p, b_p


def feature_regression_padded(x, Wt_p, b_p, *, D=None,
                              tm_max=512, tn_max=512, tk_max=2048,
                              vmem_budget=40 * 1024 * 1024,
                              precision=None):
    """x: (B, D); Wt_p/b_p from prepare_feature_regression_params -> (B, D)."""
    B, Dx = x.shape
    D = Dx if D is None else D
    assert Dx == D
    d128 = Wt_p.shape[0]
    assert Wt_p.shape == (d128, d128) and b_p.shape == (1, d128)
    assert d128 == _round_up(D, 128)

    # Batch tile: multiple of 8 that exactly divides round_up(B, 8).
    b8 = _round_up(B, 8)
    tm = _pick_tile(b8, 8, tm_max)
    B_pad = b8

    # Feature tile: multiple of 128 that exactly divides round_up(D, 128), so
    # D_pad never grows past d128 (fixes the 640 -> 1024 over-padding).
    tn = _pick_tile(d128, 128, tn_max)

    x_p = x
    if B_pad != B or d128 != D:
        x_p = jnp.zeros((B_pad, d128), x.dtype).at[:B, :D].set(x)

    out_dtype = x.dtype
    # Explicit VMEM accounting (conservative f32 element size, double-buffered).
    full_k_bytes = 2 * (tm * d128 + d128 * tn + tn + tm * tn) * 4

    if full_k_bytes <= vmem_budget:
        # Collapse the reduction: single MXU pass + bias per output tile.
        grid = (B_pad // tm, d128 // tn)
        vmem_limit = int(min(max(full_k_bytes + (8 << 20), 32 << 20), 48 << 20))
        out_p = pl.pallas_call(
            _make_fused_k_kernel(precision),
            out_shape=jax.ShapeDtypeStruct((B_pad, d128), out_dtype),
            grid_spec=pltpu.PrefetchScalarGridSpec(
                num_scalar_prefetch=0,
                grid=grid,
                in_specs=[
                    pl.BlockSpec((tm, d128), lambda i, j: (i, 0)),   # x
                    pl.BlockSpec((d128, tn), lambda i, j: (0, j)),   # Wt (K, N)
                    pl.BlockSpec((1, tn), lambda i, j: (0, j)),      # bias
                ],
                out_specs=pl.BlockSpec((tm, tn), lambda i, j: (i, j)),
            ),
            compiler_params=pltpu.CompilerParams(
                dimension_semantics=("parallel", "parallel"),
                vmem_limit_bytes=vmem_limit,
            ),
        )(x_p, Wt_p, b_p)
    else:
        # Large D: tile the reduction (last grid axis, "arbitrary").
        tk = _pick_tk(d128, tm, tn, vmem_budget, tk_max)
        grid = (B_pad // tm, d128 // tn, d128 // tk)
        needed = _tiled_bytes(tm, tk, tn)
        vmem_limit = int(min(max(needed + (8 << 20), 32 << 20), 48 << 20))
        in_specs = [
            pl.BlockSpec((tm, tk), lambda i, j, k: (i, k)),   # x
            pl.BlockSpec((tk, tn), lambda i, j, k: (k, j)),   # Wt (K, N)
            pl.BlockSpec((1, tn), lambda i, j, k: (0, j)),    # bias
        ]
        out_spec = pl.BlockSpec((tm, tn), lambda i, j, k: (i, j))
        if out_dtype == jnp.float32:
            kernel = _make_tiled_k_kernel_f32(precision)
            scratch = []
        else:
            kernel = _make_tiled_k_kernel_acc(precision)
            scratch = [pltpu.VMEM((tm, tn), jnp.float32)]
        out_p = pl.pallas_call(
            kernel,
            out_shape=jax.ShapeDtypeStruct((B_pad, d128), out_dtype),
            grid_spec=pltpu.PrefetchScalarGridSpec(
                num_scalar_prefetch=0,
                grid=grid,
                in_specs=in_specs,
                out_specs=out_spec,
                scratch_shapes=scratch,
            ),
            compiler_params=pltpu.CompilerParams(
                dimension_semantics=("parallel", "parallel", "arbitrary"),
                vmem_limit_bytes=vmem_limit,
            ),
        )(x_p, Wt_p, b_p)

    if B_pad == B and d128 == D:
        return out_p
    return out_p[:B, :D]


def feature_regression(x, W, b, **kwargs):
    """Convenience one-shot wrapper (prepares params per call).

    For the RITS per-timestep loop, call prepare_feature_regression_params()
    once and feature_regression_padded() per step instead.
    """
    Wt_p, b_p = prepare_feature_regression_params(W, b)
    return feature_regression_padded(x, Wt_p, b_p, D=W.shape[0], **kwargs)


def _reference(x, W, b):
    D = W.shape[0]
    m = jnp.ones((D, D), W.dtype) - jnp.eye(D, dtype=W.dtype)
    return x @ (W * m).T + b


if __name__ == "__main__":
    key = jax.random.PRNGKey(0)
    k_x, k_w, k_b = jax.random.split(key, 3)

    # --- RITS-sized shape (input_size=32, batch=8); preprocessing hoisted. ---
    batch, input_size = 8, 32
    stdv = 1.0 / math.sqrt(input_size)
    W = jax.random.uniform(k_w, (input_size, input_size),
                           minval=-stdv, maxval=stdv, dtype=jnp.float32)
    b = jax.random.uniform(k_b, (input_size,),
                           minval=-stdv, maxval=stdv, dtype=jnp.float32)
    x = jax.random.normal(k_x, (batch, input_size), dtype=jnp.float32)

    Wt_p, b_p = prepare_feature_regression_params(W, b)   # once per model
    out = jax.block_until_ready(
        feature_regression_padded(x, Wt_p, b_p, D=input_size))
    ref = _reference(x, W, b)
    assert out.shape == (batch, input_size)
    assert jnp.allclose(out, ref, atol=1e-5, rtol=1e-5)

    # --- D=640: D_pad stays 640 (5 N-blocks of 128), fused-K path. ---
    k_x2, k_w2, k_b2 = jax.random.split(jax.random.PRNGKey(1), 3)
    B2, D2 = 16, 640
    stdv2 = 1.0 / math.sqrt(D2)
    W2 = jax.random.uniform(k_w2, (D2, D2), minval=-stdv2, maxval=stdv2,
                            dtype=jnp.float32)
    b2 = jax.random.uniform(k_b2, (D2,), minval=-stdv2, maxval=stdv2,
                            dtype=jnp.float32)
    x2 = jax.random.normal(k_x2, (B2, D2), dtype=jnp.float32)
    out2 = jax.block_until_ready(feature_regression(x2, W2, b2))
    ref2 = _reference(x2, W2, b2)
    assert out2.shape == (B2, D2)
    assert jnp.allclose(out2, ref2, atol=1e-4, rtol=1e-4)

    # --- Force the tiled-K ("arbitrary" reduction) path via a tiny VMEM
    # budget to exercise the direct-into-o_ref f32 accumulation. ---
    k_x3, k_w3, k_b3 = jax.random.split(jax.random.PRNGKey(2), 3)
    B3, D3 = 16, 384
    stdv3 = 1.0 / math.sqrt(D3)
    W3 = jax.random.uniform(k_w3, (D3, D3), minval=-stdv3, maxval=stdv3,
                            dtype=jnp.float32)
    b3 = jax.random.uniform(k_b3, (D3,), minval=-stdv3, maxval=stdv3,
                            dtype=jnp.float32)
    x3 = jax.random.normal(k_x3, (B3, D3), dtype=jnp.float32)
    out3 = jax.block_until_ready(
        feature_regression(x3, W3, b3, vmem_budget=256 * 1024))
    ref3 = _reference(x3, W3, b3)
    assert out3.shape == (B3, D3)
    assert jnp.allclose(out3, ref3, atol=1e-4, rtol=1e-4)

    print("KERNEL_OK")
</pallas_src>

<mosaic_0001>
module attributes {stable_mosaic.version = 11 : i64} {
  func.func @kernel(%arg0: i32, %arg1: i32, %arg2: memref<8x128xf32, #tpu.memory_space<vmem>>, %arg3: memref<128x128xf32, #tpu.memory_space<vmem>>, %arg4: memref<1x128xf32, #tpu.memory_space<vmem>>, %arg5: memref<8x128xf32, #tpu.memory_space<vmem>>) attributes {dimension_semantics = [#tpu.dimension_semantics<parallel>, #tpu.dimension_semantics<parallel>], iteration_bounds = array<i64: 1, 1>, scalar_prefetch = 0 : i64, scratch_operands = 0 : i64, tpu.core_type = #tpu.core_type<tc>, window_params = [{transform_indices = @transform_0, window_bounds = array<i64: 8, 128>}, {transform_indices = @transform_1, window_bounds = array<i64: 128, 128>}, {transform_indices = @transform_2, window_bounds = array<i64: 1, 128>}, {transform_indices = @transform_3, window_bounds = array<i64: 8, 128>}]} {
    %c0 = arith.constant 0 : index
    %c0_0 = arith.constant 0 : index
    %0 = vector.load %arg2[%c0, %c0_0] : memref<8x128xf32, #tpu.memory_space<vmem>>, vector<8x128xf32>
    %c0_1 = arith.constant 0 : index
    %c0_2 = arith.constant 0 : index
    %1 = vector.load %arg3[%c0_1, %c0_2] : memref<128x128xf32, #tpu.memory_space<vmem>>, vector<128x128xf32>
    %cst = arith.constant dense<0.000000e+00> : vector<8x128xf32>
    %2 = tpu.matmul %0, %1, %cst {dimension_numbers = #tpu.dot_dimension_numbers<[1], [0], [0], [1], [0, 0, 1, 1], [], []>} : vector<8x128xf32>, vector<128x128xf32>, vector<8x128xf32> -> vector<8x128xf32>
    %c0_3 = arith.constant 0 : index
    %c0_4 = arith.constant 0 : index
    %3 = vector.load %arg4[%c0_3, %c0_4] : memref<1x128xf32, #tpu.memory_space<vmem>>, vector<1x128xf32>
    %4 = vector.broadcast %3 : vector<1x128xf32> to vector<8x128xf32>
    %5 = arith.addf %2, %4 : vector<8x128xf32>
    %c0_5 = arith.constant 0 : index
    %c0_6 = arith.constant 0 : index
    %6 = vector.load %arg5[%c0_5, %c0_6] : memref<8x128xf32, #tpu.memory_space<vmem>>, vector<8x128xf32>
    tpu.vector_store %arg5[%c0_5, %c0_6], %5 {strides = array<i32>} : memref<8x128xf32, #tpu.memory_space<vmem>>, vector<8x128xf32>,
    return
  }
  func.func @transform_0(%arg0: i32, %arg1: i32) -> (i32, i32) {
    %c0_i32 = arith.constant 0 : i32
    %c0_i32_0 = arith.constant 0 : i32
    return %arg0, %c0_i32 : i32, i32
  }
  func.func @transform_1(%arg0: i32, %arg1: i32) -> (i32, i32) {
    %c0_i32 = arith.constant 0 : i32
    %c0_i32_0 = arith.constant 0 : i32
    return %c0_i32, %arg1 : i32, i32
  }
  func.func @transform_2(%arg0: i32, %arg1: i32) -> (i32, i32) {
    %c0_i32 = arith.constant 0 : i32
    %c0_i32_0 = arith.constant 0 : i32
    return %c0_i32, %arg1 : i32, i32
  }
  func.func @transform_3(%arg0: i32, %arg1: i32) -> (i32, i32) {
    %c0_i32 = arith.constant 0 : i32
    return %arg0, %arg1 : i32, i32
  }
}

</mosaic_0001>

<llo_original>
// kernel: tpu_custom_call.1
$region0: #{tpu_custom_call.1}
  #allocation0 [shape = 'u32[]', space=smem, size = 0x4, offset = 0x4, fixed_abs, tag = 'smem constant byte address 0x4 - core index']
  #allocation1 [shape = 'u32[144,128]{1,0:T(1,128)}', space=vmem, size = 0x12000, scoped, tag = 'internal scratch']
  %s0 = inlined_call_operand.hbm [shape: f32[8,128], index: 0, kind: input, shape index: {}]
  %s1 = inlined_call_operand.hbm [shape: f32[128,128], index: 1, kind: input, shape index: {}]
  %s2 = inlined_call_operand.vmem [shape: f32[1,128], index: 2, kind: input, shape index: {}]
  %s3 = inlined_call_operand.hbm [shape: f32[8,128], index: 3, kind: output, shape index: {}]
  %s4 = sld [smem:[#allocation0]]
  $region30: #{tpu_custom_call.1} parent=0
    _
  %s6 = ssub.s32 1, %s4
  %s7 = scalar_select 0, %s6, %s4
  $region1: #{tpu_custom_call.1} parent=0
    #allocation2 [shape = 'u8[4096]{0}', space=vmem, size = 0x1000, scoped, tag = 'input window, operand 0, single buffered']
    #allocation3 [shape = 's32[1]{0}', space=sflag, size = 0x4, scoped, tag = 'scoped memory for tpu_custom_call.1']
    #allocation4 [shape = 's32[1]{0}', space=sflag, size = 0x4, scoped, tag = 'scoped memory for tpu_custom_call.1']
    #allocation5 [shape = 'u8[65536]{0}', space=vmem, size = 0x10000, scoped, tag = 'input window, operand 1, single buffered']
    #allocation6 [shape = 's32[1]{0}', space=sflag, size = 0x4, scoped, tag = 'scoped memory for tpu_custom_call.1']
    #allocation7 [shape = 'u8[4096]{0}', space=vmem, size = 0x1000, scoped, tag = 'output window, operand 0, single buffered']
    %8 = vsyncpa [#allocation3], 0
    %9 = vsyncpa [#allocation6], 0
    %10 = vsyncpa [#allocation4], 0
    // Predicated region
    $region2: #{tpu_custom_call.1} parent=1 // pred_check
      _
    $region3: #{tpu_custom_call.1} parent=1 // pred_check_branch
      %12 = sbr.rel (0) target = $region5
    $region4: #{tpu_custom_call.1} parent=1 // pred_region
      %s14 = ssub.s32 128, 128
      %15 = vsyncadd [#allocation3], %s14
      %s17 = sshll.u32 [#allocation2], 4
      %s18 = int_to_ptr.vmem [resolvable:$true] %s17
      %20 = dma.hbm_to_vmem [thread:$0]  %s0, 128, %s18, [#allocation3]
    $region5: #{tpu_custom_call.1} parent=1 // pred_fallthru
      _
    // Predicated region
    $region6: #{tpu_custom_call.1} parent=1 // pred_check
      _
    $region7: #{tpu_custom_call.1} parent=1 // pred_check_branch
      %22 = sbr.rel (0) target = $region9
    $region8: #{tpu_custom_call.1} parent=1 // pred_region
      %s24 = ssub.s32 2048, 2048
      %25 = vsyncadd [#allocation6], %s24
      %s26 = sshll.u32 [#allocation5], 4
      %s27 = int_to_ptr.vmem [resolvable:$true] %s26
      %32 = dma.hbm_to_vmem [thread:$0]  %s1, 2048, %s27, [#allocation6], 128, 128, 8
    $region9: #{tpu_custom_call.1} parent=1 // pred_fallthru
      _
    // Predicated region
    $region10: #{tpu_custom_call.1} parent=1 // pred_check
      _
    $region11: #{tpu_custom_call.1} parent=1 // pred_check_branch
      %34 = sbr.rel (0) target = $region13
    $region12: #{tpu_custom_call.1} parent=1 // pred_region
      _
    $region13: #{tpu_custom_call.1} parent=1 // pred_fallthru
      _
    // Predicated region
    $region14: #{tpu_custom_call.1} parent=1 // pred_check
      _
    $region15: #{tpu_custom_call.1} parent=1 // pred_check_branch
      %36 = sbr.rel (0) target = $region17
    $region16: #{tpu_custom_call.1} parent=1 // pred_region
      %37 = dma.done [#allocation3], 128
    $region17: #{tpu_custom_call.1} parent=1 // pred_fallthru
      _
    // Predicated region
    $region18: #{tpu_custom_call.1} parent=1 // pred_check
      _
    $region19: #{tpu_custom_call.1} parent=1 // pred_check_branch
      %39 = sbr.rel (0) target = $region21
    $region20: #{tpu_custom_call.1} parent=1 // pred_region
      %40 = dma.done [#allocation6], 2048
    $region21: #{tpu_custom_call.1} parent=1 // pred_fallthru
      _
    %v41 = vld [vmem:[#allocation2] sm:$0xff]
    %v42 = vld [vmem:[#allocation5] sm:$0xff]
    %v43 = vld [vmem:[#allocation5 + $0x8] sm:$0xff]
    %v44 = vld [vmem:[#allocation5 + $0x10] sm:$0xff]
    %v45 = vld [vmem:[#allocation5 + $0x18] sm:$0xff]
    %v46 = vld [vmem:[#allocation5 + $0x20] sm:$0xff]
    %v47 = vld [vmem:[#allocation5 + $0x28] sm:$0xff]
    %v48 = vld [vmem:[#allocation5 + $0x30] sm:$0xff]
    %v49 = vld [vmem:[#allocation5 + $0x38] sm:$0xff]
    %v50 = vld [vmem:[#allocation5 + $0x40] sm:$0xff]
    %v51 = vld [vmem:[#allocation5 + $0x48] sm:$0xff]
    %v52 = vld [vmem:[#allocation5 + $0x50] sm:$0xff]
    %v53 = vld [vmem:[#allocation5 + $0x58] sm:$0xff]
    %v54 = vld [vmem:[#allocation5 + $0x60] sm:$0xff]
    %v55 = vld [vmem:[#allocation5 + $0x68] sm:$0xff]
    %v56 = vld [vmem:[#allocation5 + $0x70] sm:$0xff]
    %v57 = vld [vmem:[#allocation5 + $0x78] sm:$0xff]
    %v58 = vld [vmem:[%s2] sm:$0x1]
    %v60 = vlaneseq
    %v61 = vshrl.u32 %v60, 7
    %v62 = vsub.s32 0, %v61
    %v63 = vrot.slane %v58, %v62
    %65 = vmatprep.subr.mxu0 0.0
    %66 = vmatpush1.msra.mxu0 %v57
    %67 = vmatprep.subr.mxu0 0.0
    %68 = vmatpush1.msra.mxu0 %v56
    %69 = vmatprep.subr.mxu0 0.0
    %70 = vmatpush1.msra.mxu0 %v55
    %71 = vmatprep.subr.mxu0 0.0
    %72 = vmatpush1.msra.mxu0 %v54
    %73 = vmatprep.subr.mxu0 0.0
    %74 = vmatpush1.msra.mxu0 %v53
    %75 = vmatprep.subr.mxu0 0.0
    %76 = vmatpush1.msra.mxu0 %v52
    %77 = vmatprep.subr.mxu0 0.0
    %78 = vmatpush1.msra.mxu0 %v51
    %79 = vmatprep.subr.mxu0 0.0
    %80 = vmatpush1.msra.mxu0 %v50
    %81 = vmatprep.subr.mxu0 0.0
    %82 = vmatpush1.msra.mxu0 %v49
    %83 = vmatprep.subr.mxu0 0.0
    %84 = vmatpush1.msra.mxu0 %v48
    %85 = vmatprep.subr.mxu0 0.0
    %86 = vmatpush1.msra.mxu0 %v47
    %87 = vmatprep.subr.mxu0 0.0
    %88 = vmatpush1.msra.mxu0 %v46
    %89 = vmatprep.subr.mxu0 0.0
    %90 = vmatpush1.msra.mxu0 %v45
    %91 = vmatprep.subr.mxu0 0.0
    %92 = vmatpush1.msra.mxu0 %v44
    %93 = vmatprep.subr.mxu0 0.0
    %94 = vmatpush1.msra.mxu0 %v43
    %95 = vmatprep.subr.mxu0 0.0
    %96 = vmatpush1.msra.mxu0 %v42
    %97 = vmatprep.subr.mxu0 0.0
    %98 = vmatpush2.msra.mxu0 0.0
    %99 = vmatprep.subr.mxu0 0.0
    %100 = vmatpush2.msra.mxu0 0.0
    %101 = vmatprep.subr.mxu0 0.0
    %102 = vmatpush2.msra.mxu0 0.0
    %103 = vmatprep.subr.mxu0 0.0
    %104 = vmatpush2.msra.mxu0 0.0
    %105 = vmatprep.subr.mxu0 0.0
    %106 = vmatpush2.msra.mxu0 0.0
    %107 = vmatprep.subr.mxu0 0.0
    %108 = vmatpush2.msra.mxu0 0.0
    %109 = vmatprep.subr.mxu0 0.0
    %110 = vmatpush2.msra.mxu0 0.0
    %111 = vmatprep.subr.mxu0 0.0
    %112 = vmatpush2.msra.mxu0 0.0
    %113 = vmatprep.subr.mxu0 0.0
    %114 = vmatpush2.msra.mxu0 0.0
    %115 = vmatprep.subr.mxu0 0.0
    %116 = vmatpush2.msra.mxu0 0.0
    %117 = vmatprep.subr.mxu0 0.0
    %118 = vmatpush2.msra.mxu0 0.0
    %119 = vmatprep.subr.mxu0 0.0
    %120 = vmatpush2.msra.mxu0 0.0
    %121 = vmatprep.subr.mxu0 0.0
    %122 = vmatpush2.msra.mxu0 0.0
    %123 = vmatprep.subr.mxu0 0.0
    %124 = vmatpush2.msra.mxu0 0.0
    %125 = vmatprep.subr.mxu0 0.0
    %126 = vmatpush2.msra.mxu0 0.0
    %127 = vmatprep.subr.mxu0 0.0
    %128 = vmatpush2.msra.mxu0 0.0
    %129 = vmatprep.mubr.f32.mxu0 0.0
    %130 = vmatmul.mubr.f32.gmra.mxu0 %v41
    %v131 = vpop.f32.mrf.mxu0
    %v132 = vadd.f32 %v63, %v131
    %v133 = vpop.f32.mrf.mxu0
    %134 = vdwg.mxu0
    %135 = vst [vmem:[#allocation7] sm:$0xff] %v132
    // Predicated region
    $region22: #{tpu_custom_call.1} parent=1 // pred_check
      _
    $region23: #{tpu_custom_call.1} parent=1 // pred_check_branch
      %137 = sbr.rel (0) target = $region25
    $region24: #{tpu_custom_call.1} parent=1 // pred_region
      %s139 = ssub.s32 128, 128
      %140 = vsyncadd [#allocation4], %s139
      %s142 = sshll.u32 [#allocation7], 4
      %s143 = int_to_ptr.vmem [resolvable:$true] %s142
      %145 = dma.vmem_to_hbm [thread:$0]  %s143, 128, %s3, [#allocation4]
    $region25: #{tpu_custom_call.1} parent=1 // pred_fallthru
      _
    // Predicated region
    $region26: #{tpu_custom_call.1} parent=1 // pred_check
      _
    $region27: #{tpu_custom_call.1} parent=1 // pred_check_branch
      %147 = sbr.rel (0) target = $region29
    $region28: #{tpu_custom_call.1} parent=1 // pred_region
      %148 = dma.done [#allocation4], 128
    $region29: #{tpu_custom_call.1} parent=1 // pred_fallthru
      _
    %149 = vsyncpa [#allocation3], 1
    %150 = vsyncpa [#allocation6], 1
    %151 = vsyncpa [#allocation4], 1

</llo_original>
